<compile_context>
chip_gen: v7x
topology: tpu7x:2x2x1
jax: 0.10.0
libtpu: 0.0.40
codegen_flags: <defaults>
</compile_context>

<pallas_src>
import functools

import jax
import jax.numpy as jnp
from jax.experimental import pallas as pl
from jax.experimental.pallas import tpu as pltpu


def _round_up(x, m):
    return ((x + m - 1) // m) * m


def _mlp_kernel(x_ref, w1_ref, b1_ref, w2_ref, o_ref):
    # Cast the f32 x tile to bf16 in-kernel (keeps HBM traffic unpadded f32,
    # no separate wrapper pad/cast pass).
    x = x_ref[...].astype(jnp.bfloat16)
    # fc1: z1 = x @ w1 + b1   (bf16 MXU matmul, f32 accumulate)
    z1 = jnp.dot(x, w1_ref[...], preferred_element_type=jnp.float32)
    z1 = z1 + b1_ref[...]           # (1, h) f32 bias broadcasts over rows
    # ReLU on the VPU (f32)
    a1 = jnp.maximum(z1, 0.0)
    # fc2: z2 = relu(z1) @ w2  (no bias), bf16 MXU inputs, f32 accumulate
    z2 = jnp.dot(a1.astype(jnp.bfloat16), w2_ref[...],
                 preferred_element_type=jnp.float32)
    o_ref[...] = z2.astype(o_ref.dtype)


def prepare_params(w1, b1, w2):
    """One-time parameter prep (cast/reshape once, outside the per-call path).

    Args:
      w1: (2p, h) f32   (transpose of torch fc1.weight)
      b1: (h,)    f32   (torch fc1.bias)
      w2: (h, p)  f32   (transpose of torch fc2.weight)
    """
    return (w1.astype(jnp.bfloat16),
            b1.reshape(1, -1).astype(jnp.float32),
            w2.astype(jnp.bfloat16))


@jax.jit
def modulo_addition_net(x, w1_bf16, b1_2d, w2_bf16):
    """Fused forward pass. x: (B, 2p) f32 -> (B, p) f32 logits."""
    B, two_p = x.shape
    h = w1_bf16.shape[1]
    p = w2_bf16.shape[1]

    # Batch tile: large (amortizes the ~0.35us per-grid-step overhead), but
    # split into >=2 blocks when possible so the "parallel" axis can shard
    # across both TensorCores on v7x. MAX_TB is the sweep knob (1024-4096).
    MAX_TB = 2048
    if B >= 2 * MAX_TB:
        tb = MAX_TB
    elif B > 32:
        tb = _round_up(pl.cdiv(B, 2), 16)   # 16 = bf16 sublane packing
    else:
        tb = _round_up(max(B, 1), 16)
    grid = (pl.cdiv(B, tb),)                 # trailing OOB rows are discarded

    flops = 2 * B * (two_p * h + h * p)
    bytes_accessed = (B * two_p * 4            # x read (f32)
                      + two_p * h * 2 + h * 4 + h * p * 2   # weights (resident)
                      + B * p * 4)             # output write (f32, unpadded)
    cost = pl.CostEstimate(flops=flops, transcendentals=0,
                           bytes_accessed=bytes_accessed)

    return pl.pallas_call(
        _mlp_kernel,
        out_shape=jax.ShapeDtypeStruct((B, p), jnp.float32),
        grid=grid,
        in_specs=[
            pl.BlockSpec((tb, two_p), lambda i: (i, 0)),    # x batch tile
            pl.BlockSpec((two_p, h), lambda i: (0, 0)),     # w1 VMEM-resident
            pl.BlockSpec((1, h), lambda i: (0, 0)),         # b1 VMEM-resident
            pl.BlockSpec((h, p), lambda i: (0, 0)),         # w2 VMEM-resident
        ],
        out_specs=pl.BlockSpec((tb, p), lambda i: (i, 0)),
        compiler_params=pltpu.CompilerParams(
            dimension_semantics=("parallel",),
            vmem_limit_bytes=32 << 20),
        cost_estimate=cost,
    )(x, w1_bf16, b1_2d, w2_bf16)


if __name__ == "__main__":
    # Module hyperparameters (small, consistent with the forward semantics).
    p = 16                      # modulus
    hidden = 32                 # number_of_hidden_units
    batch = 8

    key = jax.random.PRNGKey(0)
    k_x, k_w1, k_b1, k_w2 = jax.random.split(key, 4)

    # Deterministic synthetic parameters (shapes from the nn.Linear layers).
    x = jax.random.normal(k_x, (batch, 2 * p), dtype=jnp.float32)
    w1 = jax.random.normal(k_w1, (2 * p, hidden), dtype=jnp.float32) * 0.1
    b1 = jax.random.normal(k_b1, (hidden,), dtype=jnp.float32) * 0.1
    w2 = jax.random.normal(k_w2, (hidden, p), dtype=jnp.float32) * 0.1

    params = prepare_params(w1, b1, w2)     # cast/reshape once, reused per call
    out = modulo_addition_net(x, *params)
    out = jax.block_until_ready(out)

    # Pure-JAX f32 reference (bf16 MXU inputs -> slightly looser tolerance).
    ref = jnp.maximum(x @ w1 + b1, 0.0) @ w2
    assert out.shape == (batch, p)
    assert jnp.allclose(out, ref, atol=2e-2, rtol=2e-2), (
        float(jnp.max(jnp.abs(out - ref))))

    print("KERNEL_OK")
</pallas_src>

<mosaic_0001>
module attributes {stable_mosaic.version = 11 : i64} {
  func.func @_mlp_kernel(%arg0: i32, %arg1: memref<16x32xf32, #tpu.memory_space<vmem>>, %arg2: memref<32x32xbf16, #tpu.memory_space<vmem>>, %arg3: memref<1x32xf32, #tpu.memory_space<vmem>>, %arg4: memref<32x16xbf16, #tpu.memory_space<vmem>>, %arg5: memref<16x16xf32, #tpu.memory_space<vmem>>) attributes {dimension_semantics = [#tpu.dimension_semantics<parallel>], iteration_bounds = array<i64: 1>, scalar_prefetch = 0 : i64, scratch_operands = 0 : i64, tpu.core_type = #tpu.core_type<tc>, window_params = [{transform_indices = @transform_0, window_bounds = array<i64: 16, 32>}, {pipeline_mode = #tpu.pipeline_mode<synchronous>, transform_indices = @transform_1, window_bounds = array<i64: 32, 32>}, {pipeline_mode = #tpu.pipeline_mode<synchronous>, transform_indices = @transform_2, window_bounds = array<i64: 1, 32>}, {pipeline_mode = #tpu.pipeline_mode<synchronous>, transform_indices = @transform_3, window_bounds = array<i64: 32, 16>}, {transform_indices = @transform_4, window_bounds = array<i64: 16, 16>}]} {
    %c0 = arith.constant 0 : index
    %c0_0 = arith.constant 0 : index
    %0 = vector.load %arg1[%c0, %c0_0] : memref<16x32xf32, #tpu.memory_space<vmem>>, vector<16x32xf32>
    %1 = arith.truncf %0 : vector<16x32xf32> to vector<16x32xbf16>
    %c0_1 = arith.constant 0 : index
    %c0_2 = arith.constant 0 : index
    %2 = vector.load %arg2[%c0_1, %c0_2] : memref<32x32xbf16, #tpu.memory_space<vmem>>, vector<32x32xbf16>
    %cst = arith.constant dense<0.000000e+00> : vector<16x32xf32>
    %3 = tpu.matmul %1, %2, %cst {dimension_numbers = #tpu.dot_dimension_numbers<[1], [0], [0], [1], [0, 0, 1, 1], [], []>} : vector<16x32xbf16>, vector<32x32xbf16>, vector<16x32xf32> -> vector<16x32xf32>
    %c0_3 = arith.constant 0 : index
    %c0_4 = arith.constant 0 : index
    %4 = vector.load %arg3[%c0_3, %c0_4] : memref<1x32xf32, #tpu.memory_space<vmem>>, vector<1x32xf32>
    %5 = vector.broadcast %4 : vector<1x32xf32> to vector<16x32xf32>
    %6 = arith.addf %3, %5 : vector<16x32xf32>
    %cst_5 = arith.constant 0.000000e+00 : f32
    %7 = vector.broadcast %cst_5 : f32 to vector<16x32xf32>
    %8 = arith.maximumf %6, %7 : vector<16x32xf32>
    %9 = arith.truncf %8 : vector<16x32xf32> to vector<16x32xbf16>
    %c0_6 = arith.constant 0 : index
    %c0_7 = arith.constant 0 : index
    %10 = vector.load %arg4[%c0_6, %c0_7] : memref<32x16xbf16, #tpu.memory_space<vmem>>, vector<32x16xbf16>
    %cst_8 = arith.constant dense<0.000000e+00> : vector<16x16xf32>
    %11 = tpu.matmul %9, %10, %cst_8 {dimension_numbers = #tpu.dot_dimension_numbers<[1], [0], [0], [1], [0, 0, 1, 1], [], []>} : vector<16x32xbf16>, vector<32x16xbf16>, vector<16x16xf32> -> vector<16x16xf32>
    %c0_9 = arith.constant 0 : index
    %c0_10 = arith.constant 0 : index
    %12 = vector.load %arg5[%c0_9, %c0_10] : memref<16x16xf32, #tpu.memory_space<vmem>>, vector<16x16xf32>
    tpu.vector_store %arg5[%c0_9, %c0_10], %11 {strides = array<i32>} : memref<16x16xf32, #tpu.memory_space<vmem>>, vector<16x16xf32>,
    return
  }
  func.func @transform_0(%arg0: i32) -> (i32, i32) {
    %c0_i32 = arith.constant 0 : i32
    %c0_i32_0 = arith.constant 0 : i32
    return %arg0, %c0_i32 : i32, i32
  }
  func.func @transform_1(%arg0: i32) -> (i32, i32) {
    %c0_i32 = arith.constant 0 : i32
    %c0_i32_0 = arith.constant 0 : i32
    %c0_i32_1 = arith.constant 0 : i32
    return %c0_i32, %c0_i32_0 : i32, i32
  }
  func.func @transform_2(%arg0: i32) -> (i32, i32) {
    %c0_i32 = arith.constant 0 : i32
    %c0_i32_0 = arith.constant 0 : i32
    %c0_i32_1 = arith.constant 0 : i32
    return %c0_i32, %c0_i32_0 : i32, i32
  }
  func.func @transform_3(%arg0: i32) -> (i32, i32) {
    %c0_i32 = arith.constant 0 : i32
    %c0_i32_0 = arith.constant 0 : i32
    %c0_i32_1 = arith.constant 0 : i32
    return %c0_i32, %c0_i32_0 : i32, i32
  }
  func.func @transform_4(%arg0: i32) -> (i32, i32) {
    %c0_i32 = arith.constant 0 : i32
    %c0_i32_0 = arith.constant 0 : i32
    return %arg0, %c0_i32 : i32, i32
  }
}

</mosaic_0001>

<llo_original>
// kernel: modulo_addition_net.1
$region0: #{modulo_addition_net.1}
  #allocation0 [shape = 'u32[]', space=smem, size = 0x4, offset = 0x4, fixed_abs, tag = 'smem constant byte address 0x4 - core index']
  #allocation1 [shape = 'u32[144,128]{1,0:T(1,128)}', space=vmem, size = 0x12000, scoped, tag = 'internal scratch']
  %s0 = inlined_call_operand.vmem [shape: f32[8,32], index: 0, kind: input, shape index: {}]
  %s1 = inlined_call_operand.vmem [shape: bf16[32,32], index: 1, kind: input, shape index: {}]
  %s2 = inlined_call_operand.vmem [shape: f32[1,32], index: 2, kind: input, shape index: {}]
  %s3 = inlined_call_operand.vmem [shape: bf16[32,16], index: 3, kind: input, shape index: {}]
  %s4 = inlined_call_operand.hbm [shape: f32[8,16], index: 4, kind: output, shape index: {}]
  %s5 = sld [smem:[#allocation0]]
  $region26: #{modulo_addition_net.1} parent=0
    _
  %s7 = ssub.s32 1, %s5
  %s8 = scalar_select 0, %s7, %s5
  $region1: #{modulo_addition_net.1} parent=0
    #allocation2 [shape = 'u8[8192]{0}', space=vmem, size = 0x2000, scoped, tag = 'output window, operand 0, single buffered']
    #allocation3 [shape = 's32[1]{0}', space=sflag, size = 0x4, scoped, tag = 'scoped memory for modulo_addition_net.1']
    %9 = vsyncpa [#allocation3], 0
    // Predicated region
    $region2: #{modulo_addition_net.1} parent=1 // pred_check
      _
    $region3: #{modulo_addition_net.1} parent=1 // pred_check_branch
      %11 = sbr.rel (0) target = $region5
    $region4: #{modulo_addition_net.1} parent=1 // pred_region
      _
    $region5: #{modulo_addition_net.1} parent=1 // pred_fallthru
      _
    // Predicated region
    $region6: #{modulo_addition_net.1} parent=1 // pred_check
      _
    $region7: #{modulo_addition_net.1} parent=1 // pred_check_branch
      %13 = sbr.rel (0) target = $region9
    $region8: #{modulo_addition_net.1} parent=1 // pred_region
      _
    $region9: #{modulo_addition_net.1} parent=1 // pred_fallthru
      _
    // Predicated region
    $region10: #{modulo_addition_net.1} parent=1 // pred_check
      _
    $region11: #{modulo_addition_net.1} parent=1 // pred_check_branch
      %15 = sbr.rel (0) target = $region13
    $region12: #{modulo_addition_net.1} parent=1 // pred_region
      _
    $region13: #{modulo_addition_net.1} parent=1 // pred_fallthru
      _
    // Predicated region
    $region14: #{modulo_addition_net.1} parent=1 // pred_check
      _
    $region15: #{modulo_addition_net.1} parent=1 // pred_check_branch
      %17 = sbr.rel (0) target = $region17
    $region16: #{modulo_addition_net.1} parent=1 // pred_region
      _
    $region17: #{modulo_addition_net.1} parent=1 // pred_fallthru
      _
    %v19 = vld [vmem:[%s0] sm:$0xff]
    %v20 = vld [vmem:[%s0 + $0x8] sm:$0xff]
    %v21 = vpack.c.bf16 %v20, %v19
    %v22 = vld [vmem:[%s1] sm:$0xf]
    %v23 = vld [vmem:[%s1 + $0x4] sm:$0xf]
    %v24 = vld [vmem:[%s1 + $0x8] sm:$0xf]
    %v25 = vld [vmem:[%s1 + $0xc] sm:$0xf]
    %v26 = vld [vmem:[%s2] sm:$0x1]
    %v28 = vlaneseq
    %v29 = vshrl.u32 %v28, 7
    %v30 = vsub.s32 0, %v29
    %v31 = vrot.slane %v26, %v30
    %v37 = vunpack.c.l.b16 %v22
    %v38 = vunpack.c.l.b16 %v23
    %v39 = vunpack.c.l.b16 %v24
    %v40 = vunpack.c.l.b16 %v25
    %v41 = vpack.c.b16 %v38, %v37
    %v42 = vpack.c.b16 %v40, %v39
    %vm45 = vcmask 261120
    %v47 = vsel %vm45, %v21, 0
    %49 = vmatprep.subr.bf16.mxu0 0
    %50 = vmatpush1.bf16.msra.mxu0 %v41
    %51 = vmatprep.subr.bf16.mxu0 0
    %52 = vmatpush1.bf16.msra.mxu0 %v42
    %53 = vmatprep.subr.bf16.mxu0 0
    %54 = vmatpush1.bf16.msra.mxu0 0
    %55 = vmatprep.subr.bf16.mxu0 0
    %56 = vmatpush1.bf16.msra.mxu0 0
    %57 = vmatprep.subr.bf16.mxu0 0
    %58 = vmatpush1.bf16.msra.mxu0 0
    %59 = vmatprep.subr.bf16.mxu0 0
    %60 = vmatpush1.bf16.msra.mxu0 0
    %61 = vmatprep.subr.bf16.mxu0 0
    %62 = vmatpush1.bf16.msra.mxu0 0
    %63 = vmatprep.subr.bf16.mxu0 0
    %64 = vmatpush1.bf16.msra.mxu0 0
    %65 = vmatprep.subr.bf16.mxu0 0
    %66 = vmatpush1.bf16.msra.mxu0 0
    %67 = vmatprep.subr.bf16.mxu0 0
    %68 = vmatpush1.bf16.msra.mxu0 0
    %69 = vmatprep.subr.bf16.mxu0 0
    %70 = vmatpush1.bf16.msra.mxu0 0
    %71 = vmatprep.subr.bf16.mxu0 0
    %72 = vmatpush1.bf16.msra.mxu0 0
    %73 = vmatprep.subr.bf16.mxu0 0
    %74 = vmatpush1.bf16.msra.mxu0 0
    %75 = vmatprep.subr.bf16.mxu0 0
    %76 = vmatpush1.bf16.msra.mxu0 0
    %77 = vmatprep.subr.bf16.mxu0 0
    %78 = vmatpush1.bf16.msra.mxu0 0
    %79 = vmatprep.subr.bf16.mxu0 0
    %80 = vmatpush1.bf16.msra.mxu0 0
    %81 = vmatprep.mubr.bf16.mxu0 0
    %82 = vmatmul.mubr.bf16.gmra.mrb[0].mxu0 %v47
    %v83 = vpop.f32.mrb[0].mxu0
    %v84 = vadd.f32 %v31, %v83
    %v85 = vpop.f32.mrb[0].mxu0
    %v86 = vpop.f32.mrb[0].mxu0
    %v87 = vadd.f32 %v31, %v86
    %v88 = vpop.f32.mrb[0].mxu0
    %89 = vdwg.mxu0
    %v90 = vmax.f32 %v84, 0.0
    %v91 = vmax.f32 %v87, 0.0
    %v92 = vpack.c.bf16 %v91, %v90
    %v93 = vld [vmem:[%s3] sm:$0xf]
    %v94 = vld [vmem:[%s3 + $0x4] sm:$0xf]
    %v95 = vld [vmem:[%s3 + $0x8] sm:$0xf]
    %v96 = vld [vmem:[%s3 + $0xc] sm:$0xf]
    %v101 = vunpack.c.l.b16 %v93
    %v102 = vunpack.c.l.b16 %v94
    %v103 = vunpack.c.l.b16 %v95
    %v104 = vunpack.c.l.b16 %v96
    %v105 = vpack.c.b16 %v102, %v101
    %v106 = vpack.c.b16 %v104, %v103
    %v110 = vsel %vm45, %v92, 0
    %112 = vmatprep.subr.bf16.mxu0 0
    %113 = vmatpush1.bf16.msra.mxu0 %v105
    %114 = vmatprep.subr.bf16.mxu0 0
    %115 = vmatpush1.bf16.msra.mxu0 %v106
    %116 = vmatprep.subr.bf16.mxu0 0
    %117 = vmatpush1.bf16.msra.mxu0 0
    %118 = vmatprep.subr.bf16.mxu0 0
    %119 = vmatpush1.bf16.msra.mxu0 0
    %120 = vmatprep.subr.bf16.mxu0 0
    %121 = vmatpush1.bf16.msra.mxu0 0
    %122 = vmatprep.subr.bf16.mxu0 0
    %123 = vmatpush1.bf16.msra.mxu0 0
    %124 = vmatprep.subr.bf16.mxu0 0
    %125 = vmatpush1.bf16.msra.mxu0 0
    %126 = vmatprep.subr.bf16.mxu0 0
    %127 = vmatpush1.bf16.msra.mxu0 0
    %128 = vmatprep.subr.bf16.mxu0 0
    %129 = vmatpush1.bf16.msra.mxu0 0
    %130 = vmatprep.subr.bf16.mxu0 0
    %131 = vmatpush1.bf16.msra.mxu0 0
    %132 = vmatprep.subr.bf16.mxu0 0
    %133 = vmatpush1.bf16.msra.mxu0 0
    %134 = vmatprep.subr.bf16.mxu0 0
    %135 = vmatpush1.bf16.msra.mxu0 0
    %136 = vmatprep.subr.bf16.mxu0 0
    %137 = vmatpush1.bf16.msra.mxu0 0
    %138 = vmatprep.subr.bf16.mxu0 0
    %139 = vmatpush1.bf16.msra.mxu0 0
    %140 = vmatprep.subr.bf16.mxu0 0
    %141 = vmatpush1.bf16.msra.mxu0 0
    %142 = vmatprep.subr.bf16.mxu0 0
    %143 = vmatpush1.bf16.msra.mxu0 0
    %144 = vmatprep.mubr.bf16.mxu0 0
    %145 = vmatmul.mubr.bf16.gmra.mrb[0].mxu0 %v110
    %v146 = vpop.f32.mrb[0].mxu0
    %v147 = vadd.f32 0.0, %v146
    %v148 = vpop.f32.mrb[0].mxu0
    %v149 = vpop.f32.mrb[0].mxu0
    %v150 = vadd.f32 0.0, %v149
    %v151 = vpop.f32.mrb[0].mxu0
    %152 = vdwg.mxu0
    %vm153 = vcmask 130048
    %154 = vst.msk [vmem:[#allocation2] sm:$0xff] %vm153, %v147
    %155 = vst.msk [vmem:[#allocation2 + $0x8] sm:$0xff] %vm153, %v150
    // Predicated region
    $region18: #{modulo_addition_net.1} parent=1 // pred_check
      _
    $region19: #{modulo_addition_net.1} parent=1 // pred_check_branch
      %157 = sbr.rel (0) target = $region21
    $region20: #{modulo_addition_net.1} parent=1 // pred_region
      %s159 = ssub.s32 256, 128
      %160 = vsyncadd [#allocation3], %s159
      %s161 = sshll.u32 [#allocation2], 4
      %s162 = int_to_ptr.vmem [resolvable:$true] %s161
      %167 = dma.vmem_to_hbm [thread:$0]  %s162, 128, %s4, [#allocation3], 128, 128, 8
    $region21: #{modulo_addition_net.1} parent=1 // pred_fallthru
      _
    // Predicated region
    $region22: #{modulo_addition_net.1} parent=1 // pred_check
      _
    $region23: #{modulo_addition_net.1} parent=1 // pred_check_branch
      %169 = sbr.rel (0) target = $region25
    $region24: #{modulo_addition_net.1} parent=1 // pred_region
      %170 = dma.done [#allocation3], 256
    $region25: #{modulo_addition_net.1} parent=1 // pred_fallthru
      _
    %171 = vsyncpa [#allocation3], 1

</llo_original>
